<compile_context>
chip_gen: v6e
topology: v6e:2x2x1
jax: 0.10.0
libtpu: 0.0.40
codegen_flags: <defaults>
</compile_context>

<pallas_src>
import jax
import jax.numpy as jnp
from jax.experimental import pallas as pl
from jax.experimental.pallas import tpu as pltpu


_LANE = 128
_TARGET_BLOCK_BYTES = 4 << 20   # aim for ~4 MiB of output per grid step
_MIN_GRID_STEPS = 8             # keep enough parallel steps for megacore (v7x)
_FAST_PATH_BYTES = 2 << 20      # below this total traffic, use jnp.concatenate
_VMEM_SLACK = 8 << 20           # headroom for Mosaic internal scratch / sems


def _concat_kernel(*refs):
    """refs = (*in_refs, out_ref); blocks are (Nb, c_i, T) -> (Nb, c_total, T)."""
    out_ref = refs[-1]
    off = 0
    for r in refs[:-1]:
        c = r.shape[1]                       # static per-input channel count
        out_ref[:, off:off + c, :] = r[...]  # lane-dense channel-slice copy
        off += c


def _physical_vmem_bytes():
    """Per-core VMEM capacity; conservative 64 MiB (v7x) if the query fails."""
    try:
        info = pltpu.get_tpu_info()
        for attr in ("vmem_capacity_bytes", "vmem_bytes", "vmem_size_bytes"):
            v = getattr(info, attr, None)
            if v:
                return int(v)
    except Exception:
        pass
    return 64 << 20


def _round_up(x, m):
    return -(-x // m) * m


def _pick_tiles(n, c_total, hw, itemsize, vmem_budget,
                lane_tile=None, batch_tile=None):
    """Pick (Nb, T) for blocks (Nb, c_i, T) / (Nb, c_total, T).

    T is a multiple of 128 (or the exact H*W extent when a single lane block
    suffices), sized so the double-buffered footprint ~4*Nb*c_total*T*itemsize
    stays under `vmem_budget`.  Nb folds the batch dim until the output block
    reaches ~_TARGET_BLOCK_BYTES, while keeping >= _MIN_GRID_STEPS grid steps
    when the problem is big enough.
    """
    bytes_per_lane = 4 * c_total * itemsize  # dbl-buffered inputs + output, per lane

    if lane_tile is None:
        budget_t = (vmem_budget // max(1, bytes_per_lane)) // _LANE * _LANE
        t = max(_LANE, budget_t)             # floor; limit derives from footprint
        t = min(t, _round_up(hw, _LANE))
        if t >= hw:
            t = hw                           # single lane block: exact extent
    else:
        t = lane_tile

    steps_hw = -(-hw // t)

    if batch_tile is None:
        per_out_block = c_total * t * itemsize
        nb = 1
        if per_out_block < _TARGET_BLOCK_BYTES:
            nb = -(-_TARGET_BLOCK_BYTES // per_out_block)
        nb = min(nb, n)
        nb = min(nb, max(1, vmem_budget // (4 * per_out_block)))
        # Keep the grid deep enough that both TensorCores get work (v7x).
        if n * steps_hw >= _MIN_GRID_STEPS:
            q = -(-_MIN_GRID_STEPS // steps_hw)
            nb = min(nb, max(1, n // q))
        nb = max(1, nb)
    else:
        nb = batch_tile

    footprint = 4 * nb * c_total * t * itemsize
    return nb, t, footprint


def concat_channels(xs, *, min_pallas_bytes=_FAST_PATH_BYTES,
                    lane_tile=None, batch_tile=None):
    """Pallas equivalent of torch.cat(xs, dim=1) for NCHW tensors."""
    assert len(xs) >= 1
    if len(xs) == 1:
        return xs[0]

    N, _, H, W = xs[0].shape
    dtype = xs[0].dtype
    for x in xs:
        assert x.ndim == 4 and x.shape[0] == N and x.shape[2] == H and x.shape[3] == W
        assert x.dtype == dtype

    channels = [int(x.shape[1]) for x in xs]
    c_total = sum(channels)
    hw = H * W
    itemsize = jnp.dtype(dtype).itemsize
    out_bytes = N * c_total * hw * itemsize

    # Fast path: for tiny tensors the pallas_call launch + per-step overhead
    # dominates; XLA's native concat (often fused into the consumer) wins.
    if 2 * out_bytes < min_pallas_bytes:
        return jnp.concatenate(xs, axis=1)

    physical_vmem = _physical_vmem_bytes()
    vmem_budget = int(physical_vmem * 0.7)   # ~90 MiB on v5e/v6e, ~45 MiB on v7x

    nb, t, footprint = _pick_tiles(N, c_total, hw, itemsize, vmem_budget,
                                   lane_tile=lane_tile, batch_tile=batch_tile)
    grid = (pl.cdiv(N, nb), pl.cdiv(hw, t))

    # Lane-dense view: (N, C, H, W) -> (N, C, H*W).  Free for contiguous NCHW.
    xs_flat = [x.reshape(N, c, hw) for x, c in zip(xs, channels)]

    in_specs = [pl.BlockSpec((nb, c, t), lambda b, s: (b, 0, s)) for c in channels]
    out_spec = pl.BlockSpec((nb, c_total, t), lambda b, s: (b, 0, s))

    # Limit derived from the actual double-buffered footprint plus slack,
    # clipped below physical VMEM.
    vmem_limit = min(int(physical_vmem * 0.98),
                     max(footprint + _VMEM_SLACK, 16 << 20))

    out_flat = pl.pallas_call(
        _concat_kernel,
        out_shape=jax.ShapeDtypeStruct((N, c_total, hw), dtype),
        grid_spec=pltpu.PrefetchScalarGridSpec(
            num_scalar_prefetch=0,
            grid=grid,
            in_specs=in_specs,
            out_specs=out_spec,
        ),
        compiler_params=pltpu.CompilerParams(
            # Pure copy: every block is independent -> both axes parallel so
            # megacore (v7x) can split the bandwidth-bound work.
            dimension_semantics=("parallel", "parallel"),
            vmem_limit_bytes=vmem_limit,
        ),
        # Pure data movement: read + write of the full output.
        cost_estimate=pl.CostEstimate(
            flops=0, transcendentals=0, bytes_accessed=2 * out_bytes),
    )(*xs_flat)

    return out_flat.reshape(N, c_total, H, W)


class Concat:
    """Mirror of the PyTorch module. Channel concat (dim=1) of 4-D NCHW inputs
    uses the Pallas kernel; everything else falls back to XLA's concatenate."""

    def __init__(self, dimension=1):
        self.dimension = dimension

    def __call__(self, x):
        xs = list(x)
        if (self.dimension == 1 and len(xs) >= 1
                and all(hasattr(xi, "ndim") and xi.ndim == 4 for xi in xs)
                and all(xi.dtype == xs[0].dtype for xi in xs)):
            return concat_channels(xs)
        # TODO(synk): non-channel / non-4D concat handled by XLA, not the kernel.
        return jnp.concatenate(xs, axis=self.dimension)


if __name__ == "__main__":
    key = jax.random.PRNGKey(0)
    k1, k2, k3, k4, k5, k6 = jax.random.split(key, 6)

    # 1) Pallas kernel path on small NCHW inputs (fast path disabled so the
    #    kernel actually runs).
    x1 = jax.random.normal(k1, (2, 4, 16, 16), dtype=jnp.float32)
    x2 = jax.random.normal(k2, (2, 8, 16, 16), dtype=jnp.float32)
    x3 = jax.random.normal(k3, (2, 4, 16, 16), dtype=jnp.float32)
    out = jax.block_until_ready(concat_channels([x1, x2, x3], min_pallas_bytes=0))
    ref = jnp.concatenate([x1, x2, x3], axis=1)
    assert out.shape == (2, 16, 16, 16), out.shape
    assert out.dtype == ref.dtype
    assert jnp.array_equal(out, ref)

    # 2) Non-128-multiple spatial size (13x13) with a forced 128 lane tile so the
    #    cdiv grid + masked boundary block path is exercised.
    y1 = jax.random.normal(k4, (3, 4, 13, 13), dtype=jnp.float32)
    y2 = jax.random.normal(k5, (3, 5, 13, 13), dtype=jnp.float32)
    y3 = jax.random.normal(k6, (3, 7, 13, 13), dtype=jnp.float32)
    out2 = jax.block_until_ready(
        concat_channels([y1, y2, y3], min_pallas_bytes=0, lane_tile=_LANE))
    ref2 = jnp.concatenate([y1, y2, y3], axis=1)
    assert out2.shape == (3, 16, 13, 13), out2.shape
    assert jnp.array_equal(out2, ref2)

    # 3) Module interface (tiny input takes the jnp.concatenate fast path).
    module = Concat(dimension=1)
    out3 = jax.block_until_ready(module([x1, x2, x3]))
    assert jnp.array_equal(out3, ref)

    print("KERNEL_OK")
</pallas_src>

<mosaic_0001>
module attributes {stable_mosaic.version = 11 : i64} {
  func.func @_concat_kernel(%arg0: i32, %arg1: i32, %arg2: memref<2x4x256xf32, #tpu.memory_space<vmem>>, %arg3: memref<2x8x256xf32, #tpu.memory_space<vmem>>, %arg4: memref<2x4x256xf32, #tpu.memory_space<vmem>>, %arg5: memref<2x16x256xf32, #tpu.memory_space<vmem>>) attributes {dimension_semantics = [#tpu.dimension_semantics<parallel>, #tpu.dimension_semantics<parallel>], iteration_bounds = array<i64: 1, 1>, scalar_prefetch = 0 : i64, scratch_operands = 0 : i64, tpu.core_type = #tpu.core_type<tc>, window_params = [{transform_indices = @transform_0, window_bounds = array<i64: 2, 4, 256>}, {transform_indices = @transform_1, window_bounds = array<i64: 2, 8, 256>}, {transform_indices = @transform_2, window_bounds = array<i64: 2, 4, 256>}, {transform_indices = @transform_3, window_bounds = array<i64: 2, 16, 256>}]} {
    %c0 = arith.constant 0 : index
    %c0_0 = arith.constant 0 : index
    %c0_1 = arith.constant 0 : index
    %0 = vector.load %arg2[%c0, %c0_0, %c0_1] : memref<2x4x256xf32, #tpu.memory_space<vmem>>, vector<2x4x256xf32>
    %c0_2 = arith.constant 0 : index
    %c0_3 = arith.constant 0 : index
    %c0_4 = arith.constant 0 : index
    %1 = vector.load %arg5[%c0_2, %c0_3, %c0_4] : memref<2x16x256xf32, #tpu.memory_space<vmem>>, vector<2x4x256xf32>
    tpu.vector_store %arg5[%c0_2, %c0_3, %c0_4], %0 {strides = array<i32>} : memref<2x16x256xf32, #tpu.memory_space<vmem>>, vector<2x4x256xf32>,
    %c0_5 = arith.constant 0 : index
    %c0_6 = arith.constant 0 : index
    %c0_7 = arith.constant 0 : index
    %2 = vector.load %arg3[%c0_5, %c0_6, %c0_7] : memref<2x8x256xf32, #tpu.memory_space<vmem>>, vector<2x8x256xf32>
    %c0_8 = arith.constant 0 : index
    %c4 = arith.constant 4 : index
    %c0_9 = arith.constant 0 : index
    %3 = vector.load %arg5[%c0_8, %c4, %c0_9] : memref<2x16x256xf32, #tpu.memory_space<vmem>>, vector<2x8x256xf32>
    tpu.vector_store %arg5[%c0_8, %c4, %c0_9], %2 {strides = array<i32>} : memref<2x16x256xf32, #tpu.memory_space<vmem>>, vector<2x8x256xf32>,
    %c0_10 = arith.constant 0 : index
    %c0_11 = arith.constant 0 : index
    %c0_12 = arith.constant 0 : index
    %4 = vector.load %arg4[%c0_10, %c0_11, %c0_12] : memref<2x4x256xf32, #tpu.memory_space<vmem>>, vector<2x4x256xf32>
    %c0_13 = arith.constant 0 : index
    %c12 = arith.constant 12 : index
    %c0_14 = arith.constant 0 : index
    %5 = vector.load %arg5[%c0_13, %c12, %c0_14] : memref<2x16x256xf32, #tpu.memory_space<vmem>>, vector<2x4x256xf32>
    tpu.vector_store %arg5[%c0_13, %c12, %c0_14], %4 {strides = array<i32>} : memref<2x16x256xf32, #tpu.memory_space<vmem>>, vector<2x4x256xf32>,
    return
  }
  func.func @transform_0(%arg0: i32, %arg1: i32) -> (i32, i32, i32) {
    %c0_i32 = arith.constant 0 : i32
    %c0_i32_0 = arith.constant 0 : i32
    return %arg0, %c0_i32, %arg1 : i32, i32, i32
  }
  func.func @transform_1(%arg0: i32, %arg1: i32) -> (i32, i32, i32) {
    %c0_i32 = arith.constant 0 : i32
    %c0_i32_0 = arith.constant 0 : i32
    return %arg0, %c0_i32, %arg1 : i32, i32, i32
  }
  func.func @transform_2(%arg0: i32, %arg1: i32) -> (i32, i32, i32) {
    %c0_i32 = arith.constant 0 : i32
    %c0_i32_0 = arith.constant 0 : i32
    return %arg0, %c0_i32, %arg1 : i32, i32, i32
  }
  func.func @transform_3(%arg0: i32, %arg1: i32) -> (i32, i32, i32) {
    %c0_i32 = arith.constant 0 : i32
    %c0_i32_0 = arith.constant 0 : i32
    return %arg0, %c0_i32, %arg1 : i32, i32, i32
  }
}

</mosaic_0001>

<llo_original>
// kernel: tpu_custom_call.1
$region0: #{tpu_custom_call.1}
  #allocation0 [shape = 'u32[]', space=smem, size = 0x4, offset = 0x4, fixed_abs, tag = 'smem constant byte address 0x4 - core index']
  #allocation1 [shape = 'u32[144,128]{1,0:T(1,128)}', space=vmem, size = 0x12000, scoped, tag = 'internal scratch']
  %s0 = inlined_call_operand.hbm [shape: f32[2,4,256], index: 0, kind: input, shape index: {}]
  %s1 = inlined_call_operand.hbm [shape: f32[2,8,256], index: 1, kind: input, shape index: {}]
  %s2 = inlined_call_operand.hbm [shape: f32[2,4,256], index: 2, kind: input, shape index: {}]
  %s3 = inlined_call_operand.hbm [shape: f32[2,16,256], index: 3, kind: output, shape index: {}]
  %s4 = sld [smem:[#allocation0]]
  $region34: #{tpu_custom_call.1} parent=0
    _
  %s6 = ssub.s32 1, %s4
  %s7 = scalar_select 0, %s6, %s4
  $region1: #{tpu_custom_call.1} parent=0
    #allocation2 [shape = 'u8[8192]{0}', space=vmem, size = 0x2000, scoped, tag = 'input window, operand 0, single buffered']
    #allocation3 [shape = 's32[1]{0}', space=sflag, size = 0x4, scoped, tag = 'scoped memory for tpu_custom_call.1']
    #allocation4 [shape = 's32[1]{0}', space=sflag, size = 0x4, scoped, tag = 'scoped memory for tpu_custom_call.1']
    #allocation5 [shape = 'u8[16384]{0}', space=vmem, size = 0x4000, scoped, tag = 'input window, operand 1, single buffered']
    #allocation6 [shape = 's32[1]{0}', space=sflag, size = 0x4, scoped, tag = 'scoped memory for tpu_custom_call.1']
    #allocation7 [shape = 'u8[8192]{0}', space=vmem, size = 0x2000, scoped, tag = 'input window, operand 2, single buffered']
    #allocation8 [shape = 'u8[32768]{0}', space=vmem, size = 0x8000, scoped, tag = 'output window, operand 0, single buffered']
    %8 = vsyncpa [#allocation3], 0
    %9 = vsyncpa [#allocation6], 0
    %10 = vsyncpa [#allocation4], 0
    // Predicated region
    $region2: #{tpu_custom_call.1} parent=1 // pred_check
      _
    $region3: #{tpu_custom_call.1} parent=1 // pred_check_branch
      %12 = sbr.rel (0) target = $region5
    $region4: #{tpu_custom_call.1} parent=1 // pred_region
      %s14 = ssub.s32 256, 256
      %15 = vsyncadd [#allocation3], %s14
      %s16 = sshll.u32 [#allocation2], 4
      %s17 = int_to_ptr.vmem [resolvable:$true] %s16
      %22 = dma.hbm_to_vmem [thread:$0]  %s0, 256, %s17, [#allocation3], 128, 128, 8
    $region5: #{tpu_custom_call.1} parent=1 // pred_fallthru
      _
    // Predicated region
    $region6: #{tpu_custom_call.1} parent=1 // pred_check
      _
    $region7: #{tpu_custom_call.1} parent=1 // pred_check_branch
      %24 = sbr.rel (0) target = $region9
    $region8: #{tpu_custom_call.1} parent=1 // pred_region
      %s26 = ssub.s32 512, 512
      %27 = vsyncadd [#allocation6], %s26
      %s28 = sshll.u32 [#allocation5], 4
      %s29 = int_to_ptr.vmem [resolvable:$true] %s28
      %34 = dma.hbm_to_vmem [thread:$0]  %s1, 512, %s29, [#allocation6], 256, 256, 16
    $region9: #{tpu_custom_call.1} parent=1 // pred_fallthru
      _
    // Predicated region
    $region10: #{tpu_custom_call.1} parent=1 // pred_check
      _
    $region11: #{tpu_custom_call.1} parent=1 // pred_check_branch
      %36 = sbr.rel (0) target = $region13
    $region12: #{tpu_custom_call.1} parent=1 // pred_region
      %s38 = ssub.s32 256, 256
      %39 = vsyncadd [#allocation6], %s38
      %s40 = sshll.u32 [#allocation7], 4
      %s41 = int_to_ptr.vmem [resolvable:$true] %s40
      %46 = dma.hbm_to_vmem [thread:$0]  %s2, 256, %s41, [#allocation6], 128, 128, 8
    $region13: #{tpu_custom_call.1} parent=1 // pred_fallthru
      _
    // Predicated region
    $region14: #{tpu_custom_call.1} parent=1 // pred_check
      _
    $region15: #{tpu_custom_call.1} parent=1 // pred_check_branch
      %48 = sbr.rel (0) target = $region17
    $region16: #{tpu_custom_call.1} parent=1 // pred_region
      %49 = dma.done [#allocation3], 256
    $region17: #{tpu_custom_call.1} parent=1 // pred_fallthru
      _
    // Predicated region
    $region18: #{tpu_custom_call.1} parent=1 // pred_check
      _
    $region19: #{tpu_custom_call.1} parent=1 // pred_check_branch
      %51 = sbr.rel (0) target = $region21
    $region20: #{tpu_custom_call.1} parent=1 // pred_region
      %52 = dma.done [#allocation6], 512
    $region21: #{tpu_custom_call.1} parent=1 // pred_fallthru
      _
    // Predicated region
    $region22: #{tpu_custom_call.1} parent=1 // pred_check
      _
    $region23: #{tpu_custom_call.1} parent=1 // pred_check_branch
      %54 = sbr.rel (0) target = $region25
    $region24: #{tpu_custom_call.1} parent=1 // pred_region
      %55 = dma.done [#allocation6], 256
    $region25: #{tpu_custom_call.1} parent=1 // pred_fallthru
      _
    %v56 = vld [vmem:[#allocation2] sm:$0xff]
    %v57 = vld [vmem:[#allocation2 + $0x8] sm:$0xff]
    %v60 = vcombine.high %v56, %v56
    %v61 = vcombine.high %v57, %v57
    %64 = vst [vmem:[#allocation8] sm:$0xf] %v56
    %65 = vst [vmem:[#allocation8 + $0x8] sm:$0xf] %v60
    %66 = vst [vmem:[#allocation8 + $0x20] sm:$0xf] %v57
    %67 = vst [vmem:[#allocation8 + $0x28] sm:$0xf] %v61
    %v68 = vld [vmem:[#allocation5] sm:$0xff]
    %v69 = vld [vmem:[#allocation5 + $0x8] sm:$0xff]
    %v70 = vld [vmem:[#allocation5 + $0x10] sm:$0xff]
    %v71 = vld [vmem:[#allocation5 + $0x18] sm:$0xff]
    %v76 = vrot.slane %v68, 4
    %v77 = vrot.slane %v69, 4
    %v78 = vrot.slane %v70, 4
    %v79 = vrot.slane %v71, 4
    %84 = vst [vmem:[#allocation8] sm:$0xf0] %v76
    %85 = vst [vmem:[#allocation8 + $0x8] sm:$0xf0] %v77
    %86 = vst [vmem:[#allocation8 + $0x10] sm:$0xf] %v76
    %87 = vst [vmem:[#allocation8 + $0x18] sm:$0xf] %v77
    %88 = vst [vmem:[#allocation8 + $0x20] sm:$0xf0] %v78
    %89 = vst [vmem:[#allocation8 + $0x28] sm:$0xf0] %v79
    %90 = vst [vmem:[#allocation8 + $0x30] sm:$0xf] %v78
    %91 = vst [vmem:[#allocation8 + $0x38] sm:$0xf] %v79
    %v92 = vld [vmem:[#allocation7] sm:$0xff]
    %v93 = vld [vmem:[#allocation7 + $0x8] sm:$0xff]
    %v96 = vcombine.low %v92, %v92
    %v97 = vcombine.low %v93, %v93
    %100 = vst [vmem:[#allocation8 + $0x10] sm:$0xf0] %v96
    %101 = vst [vmem:[#allocation8 + $0x18] sm:$0xf0] %v92
    %102 = vst [vmem:[#allocation8 + $0x30] sm:$0xf0] %v97
    %103 = vst [vmem:[#allocation8 + $0x38] sm:$0xf0] %v93
    // Predicated region
    $region26: #{tpu_custom_call.1} parent=1 // pred_check
      _
    $region27: #{tpu_custom_call.1} parent=1 // pred_check_branch
      %105 = sbr.rel (0) target = $region29
    $region28: #{tpu_custom_call.1} parent=1 // pred_region
      %s107 = ssub.s32 1024, 1024
      %108 = vsyncadd [#allocation4], %s107
      %s109 = sshll.u32 [#allocation8], 4
      %s110 = int_to_ptr.vmem [resolvable:$true] %s109
      %115 = dma.vmem_to_hbm [thread:$0]  %s110, 1024, %s3, [#allocation4], 256, 256, 16
    $region29: #{tpu_custom_call.1} parent=1 // pred_fallthru
      _
    // Predicated region
    $region30: #{tpu_custom_call.1} parent=1 // pred_check
      _
    $region31: #{tpu_custom_call.1} parent=1 // pred_check_branch
      %117 = sbr.rel (0) target = $region33
    $region32: #{tpu_custom_call.1} parent=1 // pred_region
      %118 = dma.done [#allocation4], 1024
    $region33: #{tpu_custom_call.1} parent=1 // pred_fallthru
      _
    %119 = vsyncpa [#allocation3], 1
    %120 = vsyncpa [#allocation6], 1
    %121 = vsyncpa [#allocation4], 1

</llo_original>
